<compile_context>
chip_gen: v5e
topology: v5e:2x2
jax: 0.10.0
libtpu: 0.0.40
codegen_flags: <defaults>
</compile_context>

<pallas_src>
import jax
import jax.numpy as jnp
from jax.experimental import pallas as pl
from jax.experimental.pallas import tpu as pltpu


def _round_up(x: int, m: int) -> int:
    return ((x + m - 1) // m) * m


def _mlp_kernel(x_ref, w1_ref, b1_ref, w2_ref, b2_ref, o_ref):
    # Fused forward for one batch tile: y = relu(x @ W1 + b1) @ W2 + b2.
    # Matmuls accumulate in f32 on the MXU; bias add / ReLU stay in f32 on the
    # VPU regardless of the weight dtype.
    h = jnp.dot(x_ref[...], w1_ref[...], preferred_element_type=jnp.float32)
    h = jnp.maximum(h + b1_ref[...], 0.0)
    y = jnp.dot(h.astype(w2_ref.dtype), w2_ref[...],
                preferred_element_type=jnp.float32)
    o_ref[...] = (y + b2_ref[...]).astype(o_ref.dtype)


def prepare_params(w1_oi, b1, w2_oi, b2, param_dtype=jnp.float32):
    """One-time (load / post-permutation) packing of nn.Linear params.

    Transposes PyTorch (out, in) weights to lane-dense (in, out) layout and
    zero-pads the hidden/output feature dims to multiples of 128 so the MXU
    runs lane-dense and the output store lowers to unmasked vst.  The
    contraction dim IN is intentionally left unpadded (the compiler pads K
    internally; avoids a per-call host pad of x).  Biases stay f32 (1, out)
    rows.  Done once, outside the serving path.

    Zero-padding is exact: padded hidden units have zero weight + zero bias so
    relu(0)=0 contributes nothing, and padded output columns are discarded.
    """
    H, IN = w1_oi.shape
    O, H2 = w2_oi.shape
    assert H2 == H, "fc2 input dim must match fc1 output dim"

    H_p = _round_up(H, 128)
    O_p = _round_up(O, 128)

    w1 = jnp.zeros((IN, H_p), param_dtype).at[:, :H].set(
        w1_oi.T.astype(param_dtype))
    w2 = jnp.zeros((H_p, O_p), param_dtype).at[:H, :O].set(
        w2_oi.T.astype(param_dtype))
    b1p = jnp.zeros((1, H_p), jnp.float32).at[0, :H].set(b1.astype(jnp.float32))
    b2p = jnp.zeros((1, O_p), jnp.float32).at[0, :O].set(b2.astype(jnp.float32))

    return {"w1": w1, "b1": b1p, "w2": w2, "b2": b2p,
            "in_dim": IN, "hidden_dim": H, "out_dim": O}


def permutable_model_forward(x, params, *, block_b: int = 512,
                             vmem_cap_bytes: int = 48 * 1024 * 1024,
                             split_for_two_cores: bool = True):
    """Forward pass of PermutableModel(Linear -> ReLU -> Linear).

    Args:
      x:        (B, IN) activations (f32 or bf16).
      params:   output of prepare_params().
      block_b:  batch-tile rows (rounded to a multiple of 8; sweep 512-1024).
      vmem_cap_bytes: hard cap on the scoped-VMEM request.  48 MiB is safe on
        all chips incl. v7x (64 MiB physical); on v5e/v6e (128 MiB physical)
        this may be raised toward ~100-128 MiB for large resident weights.
      split_for_two_cores: ensure >= 2 grid steps when the batch allows so the
        "parallel" axis can shard across v7x's two TensorCores.
    Returns:
      (B, O) float32
    """
    B, IN = x.shape
    assert IN == params["in_dim"], "input feature dim mismatch"
    IN_w, H_p = params["w1"].shape
    assert IN_w == IN
    O_p = params["w2"].shape[1]
    O = params["out_dim"]

    w_dtype = params["w1"].dtype
    w_bytes = params["w1"].dtype.itemsize

    # Batch tiling: pad B only to a sublane multiple (8), never to a full tile.
    B8 = _round_up(B, 8)
    TB = min(_round_up(block_b, 8), B8)
    if split_for_two_cores and B8 >= 16 and pl.cdiv(B8, TB) < 2:
        TB = _round_up(pl.cdiv(B8, 2), 8)
    num_tiles = pl.cdiv(B8, TB)

    # Match the weight dtype (bf16 weights -> bf16 MXU path; no-op for f32),
    # and pad the batch only when strictly necessary.
    x_in = x if x.dtype == w_dtype else x.astype(w_dtype)
    if B8 != B:
        x_in = jnp.pad(x_in, ((0, B8 - B), (0, 0)))

    # Scoped-VMEM request sized from actual footprint (+ headroom).
    def _vmem_need(single_buffered_weights: bool) -> int:
        stream = 2 * TB * IN * w_bytes + 2 * TB * O_p * 4  # double-buffered x/out
        resident = ((IN * H_p + H_p * O_p) * w_bytes + (H_p + O_p) * 4)
        resident *= 1 if single_buffered_weights else 2
        return stream + resident

    # Advisory cost estimate so XLA can overlap the custom call.
    flops = 2 * B8 * (IN * H_p + H_p * O_p)
    bytes_accessed = (B8 * IN * w_bytes
                      + (IN * H_p + H_p * O_p) * w_bytes
                      + (H_p + O_p) * 4
                      + B8 * O_p * 4)
    cost = pl.CostEstimate(flops=flops, transcendentals=0,
                           bytes_accessed=bytes_accessed)

    def _call(single_buffered_weights: bool):
        # Constant index_map => weights/biases stay resident in VMEM; request a
        # single buffer for them (the default would double-buffer and waste
        # VMEM on operands that never re-DMA).
        resident_kw = ({"pipeline_mode": pl.Buffered(1)}
                       if single_buffered_weights else {})
        vmem_limit = int(min(max(_vmem_need(single_buffered_weights) + (8 << 20),
                                 32 << 20),
                             vmem_cap_bytes))
        return pl.pallas_call(
            _mlp_kernel,
            out_shape=jax.ShapeDtypeStruct((B8, O_p), jnp.float32),
            grid=(num_tiles,),
            in_specs=[
                pl.BlockSpec((TB, IN), lambda i: (i, 0)),                 # streamed x
                pl.BlockSpec((IN, H_p), lambda i: (0, 0), **resident_kw),  # resident W1
                pl.BlockSpec((1, H_p), lambda i: (0, 0), **resident_kw),   # resident b1
                pl.BlockSpec((H_p, O_p), lambda i: (0, 0), **resident_kw), # resident W2
                pl.BlockSpec((1, O_p), lambda i: (0, 0), **resident_kw),   # resident b2
            ],
            out_specs=pl.BlockSpec((TB, O_p), lambda i: (i, 0)),
            compiler_params=pltpu.CompilerParams(
                dimension_semantics=("parallel",),
                vmem_limit_bytes=vmem_limit),
            cost_estimate=cost,
        )(x_in, params["w1"], params["b1"], params["w2"], params["b2"])

    try:
        out_p = _call(True)
    except Exception:
        # Compatibility fallback for Pallas versions that reject Buffered(1)
        # on the resident operands: run the (previously validated)
        # double-buffered configuration instead.
        out_p = _call(False)

    return out_p[:B, :O]


def apply_permutation_linear(weight_oi, bias, perm, dimension):
    """Mirror of PermutableModel._apply_linear_permutation (pure JAX glue).

    Operates on PyTorch (out, in)-layout weights, i.e. call this BEFORE
    prepare_params(), exactly like the PyTorch wrapper mutates nn.Linear
    weights before the forward pass.
    """
    if dimension == "input":
        weight_oi = weight_oi[:, perm]
    elif dimension == "output":
        weight_oi = weight_oi[perm, :]
        if bias is not None:
            bias = bias[perm]
    elif dimension == "both":
        weight_oi = weight_oi[perm, :][:, perm]
        if bias is not None:
            bias = bias[perm]
    return weight_oi, bias


if __name__ == "__main__":
    B, IN, H, O = 8, 32, 64, 16

    key = jax.random.PRNGKey(0)
    k_x, k_w1, k_b1, k_w2, k_b2, k_p1, k_p2 = jax.random.split(key, 7)

    x = jax.random.normal(k_x, (B, IN), dtype=jnp.float32)
    # nn.Linear-style init, PyTorch (out, in) layout
    w1 = jax.random.uniform(k_w1, (H, IN), minval=-1.0 / IN**0.5, maxval=1.0 / IN**0.5)
    b1 = jax.random.uniform(k_b1, (H,), minval=-1.0 / IN**0.5, maxval=1.0 / IN**0.5)
    w2 = jax.random.uniform(k_w2, (O, H), minval=-1.0 / H**0.5, maxval=1.0 / H**0.5)
    b2 = jax.random.uniform(k_b2, (O,), minval=-1.0 / H**0.5, maxval=1.0 / H**0.5)

    # Exercise the wrapper's permutation semantics before the forward pass:
    # permute fc1 along its input dim, fc2 along its output dim.  (Per the
    # PyTorch wrapper semantics, x is NOT re-permuted to compensate.)
    perm_in = jax.random.permutation(k_p1, IN)
    perm_out = jax.random.permutation(k_p2, O)
    w1, b1 = apply_permutation_linear(w1, b1, perm_in, "input")
    w2, b2 = apply_permutation_linear(w2, b2, perm_out, "output")

    # One-time packing (transpose + lane padding), then the hot forward path.
    # param_dtype=jnp.bfloat16 is the recommended default on v6e/v7x (halves
    # weight DMA / resident VMEM); f32 here so the tight tolerance check holds.
    params = prepare_params(w1, b1, w2, b2, param_dtype=jnp.float32)
    out = permutable_model_forward(x, params)
    out = jax.block_until_ready(out)

    # Reference check (pure JAX, same math as the PyTorch forward)
    ref = jnp.maximum(x @ w1.T + b1, 0.0) @ w2.T + b2
    assert out.shape == (B, O)
    assert jnp.allclose(out, ref, atol=1e-5, rtol=1e-5)

    print("KERNEL_OK")
</pallas_src>

<mosaic_0001>
module attributes {stable_mosaic.version = 11 : i64} {
  func.func @_mlp_kernel(%arg0: i32, %arg1: memref<8x32xf32, #tpu.memory_space<vmem>>, %arg2: memref<32x128xf32, #tpu.memory_space<vmem>>, %arg3: memref<1x128xf32, #tpu.memory_space<vmem>>, %arg4: memref<128x128xf32, #tpu.memory_space<vmem>>, %arg5: memref<1x128xf32, #tpu.memory_space<vmem>>, %arg6: memref<8x128xf32, #tpu.memory_space<vmem>>) attributes {dimension_semantics = [#tpu.dimension_semantics<parallel>], iteration_bounds = array<i64: 1>, scalar_prefetch = 0 : i64, scratch_operands = 0 : i64, tpu.core_type = #tpu.core_type<tc>, window_params = [{transform_indices = @transform_0, window_bounds = array<i64: 8, 32>}, {pipeline_mode = #tpu.pipeline_mode<synchronous>, transform_indices = @transform_1, window_bounds = array<i64: 32, 128>}, {pipeline_mode = #tpu.pipeline_mode<synchronous>, transform_indices = @transform_2, window_bounds = array<i64: 1, 128>}, {pipeline_mode = #tpu.pipeline_mode<synchronous>, transform_indices = @transform_3, window_bounds = array<i64: 128, 128>}, {pipeline_mode = #tpu.pipeline_mode<synchronous>, transform_indices = @transform_4, window_bounds = array<i64: 1, 128>}, {transform_indices = @transform_5, window_bounds = array<i64: 8, 128>}]} {
    %c0 = arith.constant 0 : index
    %c0_0 = arith.constant 0 : index
    %0 = vector.load %arg1[%c0, %c0_0] : memref<8x32xf32, #tpu.memory_space<vmem>>, vector<8x32xf32>
    %c0_1 = arith.constant 0 : index
    %c0_2 = arith.constant 0 : index
    %1 = vector.load %arg2[%c0_1, %c0_2] : memref<32x128xf32, #tpu.memory_space<vmem>>, vector<32x128xf32>
    %cst = arith.constant dense<0.000000e+00> : vector<8x128xf32>
    %2 = tpu.matmul %0, %1, %cst {dimension_numbers = #tpu.dot_dimension_numbers<[1], [0], [0], [1], [0, 0, 1, 1], [], []>} : vector<8x32xf32>, vector<32x128xf32>, vector<8x128xf32> -> vector<8x128xf32>
    %c0_3 = arith.constant 0 : index
    %c0_4 = arith.constant 0 : index
    %3 = vector.load %arg3[%c0_3, %c0_4] : memref<1x128xf32, #tpu.memory_space<vmem>>, vector<1x128xf32>
    %4 = vector.broadcast %3 : vector<1x128xf32> to vector<8x128xf32>
    %5 = arith.addf %2, %4 : vector<8x128xf32>
    %cst_5 = arith.constant 0.000000e+00 : f32
    %6 = vector.broadcast %cst_5 : f32 to vector<8x128xf32>
    %7 = arith.maximumf %5, %6 : vector<8x128xf32>
    %c0_6 = arith.constant 0 : index
    %c0_7 = arith.constant 0 : index
    %8 = vector.load %arg4[%c0_6, %c0_7] : memref<128x128xf32, #tpu.memory_space<vmem>>, vector<128x128xf32>
    %cst_8 = arith.constant dense<0.000000e+00> : vector<8x128xf32>
    %9 = tpu.matmul %7, %8, %cst_8 {dimension_numbers = #tpu.dot_dimension_numbers<[1], [0], [0], [1], [0, 0, 1, 1], [], []>} : vector<8x128xf32>, vector<128x128xf32>, vector<8x128xf32> -> vector<8x128xf32>
    %c0_9 = arith.constant 0 : index
    %c0_10 = arith.constant 0 : index
    %10 = vector.load %arg5[%c0_9, %c0_10] : memref<1x128xf32, #tpu.memory_space<vmem>>, vector<1x128xf32>
    %11 = vector.broadcast %10 : vector<1x128xf32> to vector<8x128xf32>
    %12 = arith.addf %9, %11 : vector<8x128xf32>
    %c0_11 = arith.constant 0 : index
    %c0_12 = arith.constant 0 : index
    %13 = vector.load %arg6[%c0_11, %c0_12] : memref<8x128xf32, #tpu.memory_space<vmem>>, vector<8x128xf32>
    tpu.vector_store %arg6[%c0_11, %c0_12], %12 {strides = array<i32>} : memref<8x128xf32, #tpu.memory_space<vmem>>, vector<8x128xf32>,
    return
  }
  func.func @transform_0(%arg0: i32) -> (i32, i32) {
    %c0_i32 = arith.constant 0 : i32
    %c0_i32_0 = arith.constant 0 : i32
    return %arg0, %c0_i32 : i32, i32
  }
  func.func @transform_1(%arg0: i32) -> (i32, i32) {
    %c0_i32 = arith.constant 0 : i32
    %c0_i32_0 = arith.constant 0 : i32
    %c0_i32_1 = arith.constant 0 : i32
    return %c0_i32, %c0_i32_0 : i32, i32
  }
  func.func @transform_2(%arg0: i32) -> (i32, i32) {
    %c0_i32 = arith.constant 0 : i32
    %c0_i32_0 = arith.constant 0 : i32
    %c0_i32_1 = arith.constant 0 : i32
    return %c0_i32, %c0_i32_0 : i32, i32
  }
  func.func @transform_3(%arg0: i32) -> (i32, i32) {
    %c0_i32 = arith.constant 0 : i32
    %c0_i32_0 = arith.constant 0 : i32
    %c0_i32_1 = arith.constant 0 : i32
    return %c0_i32, %c0_i32_0 : i32, i32
  }
  func.func @transform_4(%arg0: i32) -> (i32, i32) {
    %c0_i32 = arith.constant 0 : i32
    %c0_i32_0 = arith.constant 0 : i32
    %c0_i32_1 = arith.constant 0 : i32
    return %c0_i32, %c0_i32_0 : i32, i32
  }
  func.func @transform_5(%arg0: i32) -> (i32, i32) {
    %c0_i32 = arith.constant 0 : i32
    %c0_i32_0 = arith.constant 0 : i32
    return %arg0, %c0_i32 : i32, i32
  }
}

module attributes {stable_mosaic.version = 11 : i64} {
  func.func @_mlp_kernel(%arg0: i32, %arg1: memref<8x32xf32, #tpu.memory_space<vmem>>, %arg2: memref<32x128xf32, #tpu.memory_space<vmem>>, %arg3: memref<1x128xf32, #tpu.memory_space<vmem>>, %arg4: memref<128x128xf32, #tpu.memory_space<vmem>>, %arg5: memref<1x128xf32, #tpu.memory_space<vmem>>, %arg6: memref<8x128xf32, #tpu.memory_space<vmem>>) attributes {dimension_semantics = [#tpu.dimension_semantics<parallel>], iteration_bounds = array<i64: 1>, scalar_prefetch = 0 : i64, scratch_operands = 0 : i64, tpu.core_type = #tpu.core_type<tc>, window_params = [{transform_indices = @transform_0, window_bounds = array<i64: 8, 32>}, {pipeline_mode = #tpu.pipeline_mode<synchronous>, transform_indices = @transform_1, window_bounds = array<i64: 32, 128>}, {pipeline_mode = #tpu.pipeline_mode<synchronous>, transform_indices = @transform_2, window_bounds = array<i64: 1, 128>}, {pipeline_mode = #tpu.pipeline_mode<synchronous>, transform_indices = @transform_3, window_bounds = array<i64: 128, 128>}, {pipeline_mode = #tpu.pipeline_mode<synchronous>, transform_indices = @transform_4, window_bounds = array<i64: 1, 128>}, {transform_indices = @transform_5, window_bounds = array<i64: 8, 128>}]} {
    %c0 = arith.constant 0 : index
    %c0_0 = arith.constant 0 : index
    %0 = vector.load %arg1[%c0, %c0_0] : memref<8x32xf32, #tpu.memory_space<vmem>>, vector<8x32xf32>
    %c0_1 = arith.constant 0 : index
    %c0_2 = arith.constant 0 : index
    %1 = vector.load %arg2[%c0_1, %c0_2] : memref<32x128xf32, #tpu.memory_space<vmem>>, vector<32x128xf32>
    %cst = arith.constant dense<0.000000e+00> : vector<8x128xf32>
    %2 = tpu.matmul %0, %1, %cst {dimension_numbers = #tpu.dot_dimension_numbers<[1], [0], [0], [1], [0, 0, 1, 1], [], []>} : vector<8x32xf32>, vector<32x128xf32>, vector<8x128xf32> -> vector<8x128xf32>
    %c0_3 = arith.constant 0 : index
    %c0_4 = arith.constant 0 : index
    %3 = vector.load %arg3[%c0_3, %c0_4] : memref<1x128xf32, #tpu.memory_space<vmem>>, vector<1x128xf32>
    %4 = vector.broadcast %3 : vector<1x128xf32> to vector<8x128xf32>
    %5 = arith.addf %2, %4 : vector<8x128xf32>
    %cst_5 = arith.constant 0.000000e+00 : f32
    %6 = vector.broadcast %cst_5 : f32 to vector<8x128xf32>
    %7 = arith.maximumf %5, %6 : vector<8x128xf32>
    %c0_6 = arith.constant 0 : index
    %c0_7 = arith.constant 0 : index
    %8 = vector.load %arg4[%c0_6, %c0_7] : memref<128x128xf32, #tpu.memory_space<vmem>>, vector<128x128xf32>
    %cst_8 = arith.constant dense<0.000000e+00> : vector<8x128xf32>
    %9 = tpu.matmul %7, %8, %cst_8 {dimension_numbers = #tpu.dot_dimension_numbers<[1], [0], [0], [1], [0, 0, 1, 1], [], []>} : vector<8x128xf32>, vector<128x128xf32>, vector<8x128xf32> -> vector<8x128xf32>
    %c0_9 = arith.constant 0 : index
    %c0_10 = arith.constant 0 : index
    %10 = vector.load %arg5[%c0_9, %c0_10] : memref<1x128xf32, #tpu.memory_space<vmem>>, vector<1x128xf32>
    %11 = vector.broadcast %10 : vector<1x128xf32> to vector<8x128xf32>
    %12 = arith.addf %9, %11 : vector<8x128xf32>
    %c0_11 = arith.constant 0 : index
    %c0_12 = arith.constant 0 : index
    %13 = vector.load %arg6[%c0_11, %c0_12] : memref<8x128xf32, #tpu.memory_space<vmem>>, vector<8x128xf32>
    tpu.vector_store %arg6[%c0_11, %c0_12], %12 {strides = array<i32>} : memref<8x128xf32, #tpu.memory_space<vmem>>, vector<8x128xf32>,
    return
  }
  func.func @transform_0(%arg0: i32) -> (i32, i32) {
    %c0_i32 = arith.constant 0 : i32
    %c0_i32_0 = arith.constant 0 : i32
    return %arg0, %c0_i32 : i32, i32
  }
  func.func @transform_1(%arg0: i32) -> (i32, i32) {
    %c0_i32 = arith.constant 0 : i32
    %c0_i32_0 = arith.constant 0 : i32
    %c0_i32_1 = arith.constant 0 : i32
    return %c0_i32, %c0_i32_0 : i32, i32
  }
  func.func @transform_2(%arg0: i32) -> (i32, i32) {
    %c0_i32 = arith.constant 0 : i32
    %c0_i32_0 = arith.constant 0 : i32
    %c0_i32_1 = arith.constant 0 : i32
    return %c0_i32, %c0_i32_0 : i32, i32
  }
  func.func @transform_3(%arg0: i32) -> (i32, i32) {
    %c0_i32 = arith.constant 0 : i32
    %c0_i32_0 = arith.constant 0 : i32
    %c0_i32_1 = arith.constant 0 : i32
    return %c0_i32, %c0_i32_0 : i32, i32
  }
  func.func @transform_4(%arg0: i32) -> (i32, i32) {
    %c0_i32 = arith.constant 0 : i32
    %c0_i32_0 = arith.constant 0 : i32
    %c0_i32_1 = arith.constant 0 : i32
    return %c0_i32, %c0_i32_0 : i32, i32
  }
  func.func @transform_5(%arg0: i32) -> (i32, i32) {
    %c0_i32 = arith.constant 0 : i32
    %c0_i32_0 = arith.constant 0 : i32
    return %arg0, %c0_i32 : i32, i32
  }
}

</mosaic_0001>

<llo_original>
// kernel: tpu_custom_call.1
$region0: #{tpu_custom_call.1}
  #allocation0 [shape = 'u32[]', space=smem, size = 0x4, offset = 0x4, fixed_abs, tag = 'smem constant byte address 0x4 - core index']
  #allocation1 [shape = 'u32[72,128]{1,0:T(1,128)}', space=vmem, size = 0x9000, scoped, tag = 'internal scratch']
  %s0 = inlined_call_operand.hbm [shape: f32[8,32], index: 0, kind: input, shape index: {}]
  %s1 = inlined_call_operand.hbm [shape: f32[32,128], index: 1, kind: input, shape index: {}]
  %s2 = inlined_call_operand.vmem [shape: f32[1,128], index: 2, kind: input, shape index: {}]
  %s3 = inlined_call_operand.hbm [shape: f32[128,128], index: 3, kind: input, shape index: {}]
  %s4 = inlined_call_operand.vmem [shape: f32[1,128], index: 4, kind: input, shape index: {}]
  %s5 = inlined_call_operand.hbm [shape: f32[8,128], index: 5, kind: output, shape index: {}]
  %s6 = sld [smem:[#allocation0]]
  $region42: #{tpu_custom_call.1} parent=0
    _
  %s8 = ssub.s32 1, %s6
  %s9 = scalar_select 0, %s8, %s6
  $region1: #{tpu_custom_call.1} parent=0
    #allocation2 [shape = 'u8[4096]{0}', space=vmem, size = 0x1000, scoped, tag = 'input window, operand 0, single buffered']
    #allocation3 [shape = 's32[1]{0}', space=sflag, size = 0x4, scoped, tag = 'scoped memory for tpu_custom_call.1']
    #allocation4 [shape = 's32[1]{0}', space=sflag, size = 0x4, scoped, tag = 'scoped memory for tpu_custom_call.1']
    #allocation5 [shape = 'u8[16384]{0}', space=vmem, size = 0x4000, scoped, tag = 'input window, operand 1, single buffered']
    #allocation6 [shape = 's32[1]{0}', space=sflag, size = 0x4, scoped, tag = 'scoped memory for tpu_custom_call.1']
    #allocation7 [shape = 'u8[65536]{0}', space=vmem, size = 0x10000, scoped, tag = 'input window, operand 3, single buffered']
    #allocation8 [shape = 'u8[4096]{0}', space=vmem, size = 0x1000, scoped, tag = 'output window, operand 0, single buffered']
    %10 = vsyncpa [#allocation3], 0
    %11 = vsyncpa [#allocation6], 0
    %12 = vsyncpa [#allocation4], 0
    // Predicated region
    $region2: #{tpu_custom_call.1} parent=1 // pred_check
      _
    $region3: #{tpu_custom_call.1} parent=1 // pred_check_branch
      %14 = sbr.rel (0) target = $region5
    $region4: #{tpu_custom_call.1} parent=1 // pred_region
      %16 = vsyncadd [#allocation3], 0
      %s18 = sshll.u32 %s0, 4
      %s19 = int_to_ptr.hbm [resolvable:$true] %s18
      %s20 = sshll.u32 [#allocation2], 4
      %s21 = int_to_ptr.vmem [resolvable:$true] %s20
      %23 = dma.hbm_to_vmem [thread:$0]  %s19, 128, %s21, [#allocation3]
    $region5: #{tpu_custom_call.1} parent=1 // pred_fallthru
      _
    // Predicated region
    $region6: #{tpu_custom_call.1} parent=1 // pred_check
      _
    $region7: #{tpu_custom_call.1} parent=1 // pred_check_branch
      %25 = sbr.rel (0) target = $region9
    $region8: #{tpu_custom_call.1} parent=1 // pred_region
      %27 = vsyncadd [#allocation6], 0
      %s28 = sshll.u32 %s1, 4
      %s29 = int_to_ptr.hbm [resolvable:$true] %s28
      %s30 = sshll.u32 [#allocation5], 4
      %s31 = int_to_ptr.vmem [resolvable:$true] %s30
      %36 = dma.hbm_to_vmem [thread:$0]  %s29, 512, %s31, [#allocation6], 128, 128, 8
    $region9: #{tpu_custom_call.1} parent=1 // pred_fallthru
      _
    // Predicated region
    $region10: #{tpu_custom_call.1} parent=1 // pred_check
      _
    $region11: #{tpu_custom_call.1} parent=1 // pred_check_branch
      %38 = sbr.rel (0) target = $region13
    $region12: #{tpu_custom_call.1} parent=1 // pred_region
      _
    $region13: #{tpu_custom_call.1} parent=1 // pred_fallthru
      _
    // Predicated region
    $region14: #{tpu_custom_call.1} parent=1 // pred_check
      _
    $region15: #{tpu_custom_call.1} parent=1 // pred_check_branch
      %40 = sbr.rel (0) target = $region17
    $region16: #{tpu_custom_call.1} parent=1 // pred_region
      %42 = vsyncadd [#allocation6], 0
      %s43 = sshll.u32 %s3, 4
      %s44 = int_to_ptr.hbm [resolvable:$true] %s43
      %s45 = sshll.u32 [#allocation7], 4
      %s46 = int_to_ptr.vmem [resolvable:$true] %s45
      %51 = dma.hbm_to_vmem [thread:$0]  %s44, 2048, %s46, [#allocation6], 128, 128, 8
    $region17: #{tpu_custom_call.1} parent=1 // pred_fallthru
      _
    // Predicated region
    $region18: #{tpu_custom_call.1} parent=1 // pred_check
      _
    $region19: #{tpu_custom_call.1} parent=1 // pred_check_branch
      %53 = sbr.rel (0) target = $region21
    $region20: #{tpu_custom_call.1} parent=1 // pred_region
      _
    $region21: #{tpu_custom_call.1} parent=1 // pred_fallthru
      _
    // Predicated region
    $region22: #{tpu_custom_call.1} parent=1 // pred_check
      _
    $region23: #{tpu_custom_call.1} parent=1 // pred_check_branch
      %55 = sbr.rel (0) target = $region25
    $region24: #{tpu_custom_call.1} parent=1 // pred_region
      %57 = dma.done [#allocation3], 128
    $region25: #{tpu_custom_call.1} parent=1 // pred_fallthru
      _
    // Predicated region
    $region26: #{tpu_custom_call.1} parent=1 // pred_check
      _
    $region27: #{tpu_custom_call.1} parent=1 // pred_check_branch
      %59 = sbr.rel (0) target = $region29
    $region28: #{tpu_custom_call.1} parent=1 // pred_region
      %61 = dma.done [#allocation6], 512
    $region29: #{tpu_custom_call.1} parent=1 // pred_fallthru
      _
    // Predicated region
    $region30: #{tpu_custom_call.1} parent=1 // pred_check
      _
    $region31: #{tpu_custom_call.1} parent=1 // pred_check_branch
      %63 = sbr.rel (0) target = $region33
    $region32: #{tpu_custom_call.1} parent=1 // pred_region
      %65 = dma.done [#allocation6], 2048
    $region33: #{tpu_custom_call.1} parent=1 // pred_fallthru
      _
    %v66 = vld [vmem:[#allocation2] sm:$0xff]
    %v67 = vld [vmem:[#allocation5] sm:$0xff]
    %v68 = vld [vmem:[#allocation5 + $0x8] sm:$0xff]
    %v69 = vld [vmem:[#allocation5 + $0x10] sm:$0xff]
    %v70 = vld [vmem:[#allocation5 + $0x18] sm:$0xff]
    %v71 = vld [vmem:[%s2] sm:$0x1]
    %v73 = vperm.slane %v71, 0
    %vm75 = vcmask 261120
    %v77 = vsel %vm75, %v66, 0
    %79 = vmatpush.msra.mxu0 0.0
    %80 = vmatpush.msra.mxu0 0.0
    %81 = vmatpush.msra.mxu0 0.0
    %82 = vmatpush.msra.mxu0 0.0
    %83 = vmatpush.msra.mxu0 0.0
    %84 = vmatpush.msra.mxu0 0.0
    %85 = vmatpush.msra.mxu0 0.0
    %86 = vmatpush.msra.mxu0 0.0
    %87 = vmatpush.msra.mxu0 0.0
    %88 = vmatpush.msra.mxu0 0.0
    %89 = vmatpush.msra.mxu0 0.0
    %90 = vmatpush.msra.mxu0 0.0
    %91 = vmatpush.msra.mxu0 %v70
    %92 = vmatpush.msra.mxu0 %v69
    %93 = vmatpush.msra.mxu0 %v68
    %94 = vmatpush.msra.mxu0 %v67
    %95 = vmatmul.f32.gmra.mxu0 %v77
    %v96 = vpop.f32.mrf.mxu0
    %v97 = vadd.f32 %v73, %v96
    %98 = vdwg.mxu0
    %v99 = vmax.f32 %v97, 0.0
    %v100 = vld [vmem:[#allocation7] sm:$0xff]
    %v101 = vld [vmem:[#allocation7 + $0x8] sm:$0xff]
    %v102 = vld [vmem:[#allocation7 + $0x10] sm:$0xff]
    %v103 = vld [vmem:[#allocation7 + $0x18] sm:$0xff]
    %v104 = vld [vmem:[#allocation7 + $0x20] sm:$0xff]
    %v105 = vld [vmem:[#allocation7 + $0x28] sm:$0xff]
    %v106 = vld [vmem:[#allocation7 + $0x30] sm:$0xff]
    %v107 = vld [vmem:[#allocation7 + $0x38] sm:$0xff]
    %v108 = vld [vmem:[#allocation7 + $0x40] sm:$0xff]
    %v109 = vld [vmem:[#allocation7 + $0x48] sm:$0xff]
    %v110 = vld [vmem:[#allocation7 + $0x50] sm:$0xff]
    %v111 = vld [vmem:[#allocation7 + $0x58] sm:$0xff]
    %v112 = vld [vmem:[#allocation7 + $0x60] sm:$0xff]
    %v113 = vld [vmem:[#allocation7 + $0x68] sm:$0xff]
    %v114 = vld [vmem:[#allocation7 + $0x70] sm:$0xff]
    %v115 = vld [vmem:[#allocation7 + $0x78] sm:$0xff]
    %v116 = vld [vmem:[%s4] sm:$0x1]
    %v118 = vperm.slane %v116, 0
    %120 = vmatpush.msra.mxu0 %v115
    %121 = vmatpush.msra.mxu0 %v114
    %122 = vmatpush.msra.mxu0 %v113
    %123 = vmatpush.msra.mxu0 %v112
    %124 = vmatpush.msra.mxu0 %v111
    %125 = vmatpush.msra.mxu0 %v110
    %126 = vmatpush.msra.mxu0 %v109
    %127 = vmatpush.msra.mxu0 %v108
    %128 = vmatpush.msra.mxu0 %v107
    %129 = vmatpush.msra.mxu0 %v106
    %130 = vmatpush.msra.mxu0 %v105
    %131 = vmatpush.msra.mxu0 %v104
    %132 = vmatpush.msra.mxu0 %v103
    %133 = vmatpush.msra.mxu0 %v102
    %134 = vmatpush.msra.mxu0 %v101
    %135 = vmatpush.msra.mxu0 %v100
    %136 = vmatmul.f32.gmra.mxu0 %v99
    %v137 = vpop.f32.mrf.mxu0
    %v138 = vadd.f32 %v118, %v137
    %139 = vdwg.mxu0
    %140 = vst [vmem:[#allocation8] sm:$0xff] %v138
    // Predicated region
    $region34: #{tpu_custom_call.1} parent=1 // pred_check
      _
    $region35: #{tpu_custom_call.1} parent=1 // pred_check_branch
      %142 = sbr.rel (0) target = $region37
    $region36: #{tpu_custom_call.1} parent=1 // pred_region
      %144 = vsyncadd [#allocation4], 0
      %s146 = sshll.u32 [#allocation8], 4
      %s147 = int_to_ptr.vmem [resolvable:$true] %s146
      %s148 = sshll.u32 %s5, 4
      %s149 = int_to_ptr.hbm [resolvable:$true] %s148
      %151 = dma.vmem_to_hbm [thread:$0]  %s147, 128, %s149, [#allocation4]
    $region37: #{tpu_custom_call.1} parent=1 // pred_fallthru
      _
    // Predicated region
    $region38: #{tpu_custom_call.1} parent=1 // pred_check
      _
    $region39: #{tpu_custom_call.1} parent=1 // pred_check_branch
      %153 = sbr.rel (0) target = $region41
    $region40: #{tpu_custom_call.1} parent=1 // pred_region
      %155 = dma.done [#allocation4], 128
    $region41: #{tpu_custom_call.1} parent=1 // pred_fallthru
      _
    %156 = vsyncpa [#allocation3], 1
    %157 = vsyncpa [#allocation6], 1
    %158 = vsyncpa [#allocation4], 1

// kernel: tpu_custom_call.1
$region0: #{tpu_custom_call.1}
  #allocation0 [shape = 'u32[]', space=smem, size = 0x4, offset = 0x4, fixed_abs, tag = 'smem constant byte address 0x4 - core index']
  #allocation1 [shape = 'u32[72,128]{1,0:T(1,128)}', space=vmem, size = 0x9000, scoped, tag = 'internal scratch']
  %s0 = inlined_call_operand.hbm [shape: f32[8,32], index: 0, kind: input, shape index: {}]
  %s1 = inlined_call_operand.hbm [shape: f32[32,128], index: 1, kind: input, shape index: {}]
  %s2 = inlined_call_operand.vmem [shape: f32[1,128], index: 2, kind: input, shape index: {}]
  %s3 = inlined_call_operand.hbm [shape: f32[128,128], index: 3, kind: input, shape index: {}]
  %s4 = inlined_call_operand.vmem [shape: f32[1,128], index: 4, kind: input, shape index: {}]
  %s5 = inlined_call_operand.hbm [shape: f32[8,128], index: 5, kind: output, shape index: {}]
  %s6 = sld [smem:[#allocation0]]
  $region42: #{tpu_custom_call.1} parent=0
    _
  %s8 = ssub.s32 1, %s6
  %s9 = scalar_select 0, %s8, %s6
  $region1: #{tpu_custom_call.1} parent=0
    #allocation2 [shape = 'u8[4096]{0}', space=vmem, size = 0x1000, scoped, tag = 'input window, operand 0, single buffered']
    #allocation3 [shape = 's32[1]{0}', space=sflag, size = 0x4, scoped, tag = 'scoped memory for tpu_custom_call.1']
    #allocation4 [shape = 's32[1]{0}', space=sflag, size = 0x4, scoped, tag = 'scoped memory for tpu_custom_call.1']
    #allocation5 [shape = 'u8[16384]{0}', space=vmem, size = 0x4000, scoped, tag = 'input window, operand 1, single buffered']
    #allocation6 [shape = 's32[1]{0}', space=sflag, size = 0x4, scoped, tag = 'scoped memory for tpu_custom_call.1']
    #allocation7 [shape = 'u8[65536]{0}', space=vmem, size = 0x10000, scoped, tag = 'input window, operand 3, single buffered']
    #allocation8 [shape = 'u8[4096]{0}', space=vmem, size = 0x1000, scoped, tag = 'output window, operand 0, single buffered']
    %10 = vsyncpa [#allocation3], 0
    %11 = vsyncpa [#allocation6], 0
    %12 = vsyncpa [#allocation4], 0
    // Predicated region
    $region2: #{tpu_custom_call.1} parent=1 // pred_check
      _
    $region3: #{tpu_custom_call.1} parent=1 // pred_check_branch
      %14 = sbr.rel (0) target = $region5
    $region4: #{tpu_custom_call.1} parent=1 // pred_region
      %16 = vsyncadd [#allocation3], 0
      %s18 = sshll.u32 %s0, 4
      %s19 = int_to_ptr.hbm [resolvable:$true] %s18
      %s20 = sshll.u32 [#allocation2], 4
      %s21 = int_to_ptr.vmem [resolvable:$true] %s20
      %23 = dma.hbm_to_vmem [thread:$0]  %s19, 128, %s21, [#allocation3]
    $region5: #{tpu_custom_call.1} parent=1 // pred_fallthru
      _
    // Predicated region
    $region6: #{tpu_custom_call.1} parent=1 // pred_check
      _
    $region7: #{tpu_custom_call.1} parent=1 // pred_check_branch
      %25 = sbr.rel (0) target = $region9
    $region8: #{tpu_custom_call.1} parent=1 // pred_region
      %27 = vsyncadd [#allocation6], 0
      %s28 = sshll.u32 %s1, 4
      %s29 = int_to_ptr.hbm [resolvable:$true] %s28
      %s30 = sshll.u32 [#allocation5], 4
      %s31 = int_to_ptr.vmem [resolvable:$true] %s30
      %36 = dma.hbm_to_vmem [thread:$0]  %s29, 512, %s31, [#allocation6], 128, 128, 8
    $region9: #{tpu_custom_call.1} parent=1 // pred_fallthru
      _
    // Predicated region
    $region10: #{tpu_custom_call.1} parent=1 // pred_check
      _
    $region11: #{tpu_custom_call.1} parent=1 // pred_check_branch
      %38 = sbr.rel (0) target = $region13
    $region12: #{tpu_custom_call.1} parent=1 // pred_region
      _
    $region13: #{tpu_custom_call.1} parent=1 // pred_fallthru
      _
    // Predicated region
    $region14: #{tpu_custom_call.1} parent=1 // pred_check
      _
    $region15: #{tpu_custom_call.1} parent=1 // pred_check_branch
      %40 = sbr.rel (0) target = $region17
    $region16: #{tpu_custom_call.1} parent=1 // pred_region
      %42 = vsyncadd [#allocation6], 0
      %s43 = sshll.u32 %s3, 4
      %s44 = int_to_ptr.hbm [resolvable:$true] %s43
      %s45 = sshll.u32 [#allocation7], 4
      %s46 = int_to_ptr.vmem [resolvable:$true] %s45
      %51 = dma.hbm_to_vmem [thread:$0]  %s44, 2048, %s46, [#allocation6], 128, 128, 8
    $region17: #{tpu_custom_call.1} parent=1 // pred_fallthru
      _
    // Predicated region
    $region18: #{tpu_custom_call.1} parent=1 // pred_check
      _
    $region19: #{tpu_custom_call.1} parent=1 // pred_check_branch
      %53 = sbr.rel (0) target = $region21
    $region20: #{tpu_custom_call.1} parent=1 // pred_region
      _
    $region21: #{tpu_custom_call.1} parent=1 // pred_fallthru
      _
    // Predicated region
    $region22: #{tpu_custom_call.1} parent=1 // pred_check
      _
    $region23: #{tpu_custom_call.1} parent=1 // pred_check_branch
      %55 = sbr.rel (0) target = $region25
    $region24: #{tpu_custom_call.1} parent=1 // pred_region
      %57 = dma.done [#allocation3], 128
    $region25: #{tpu_custom_call.1} parent=1 // pred_fallthru
      _
    // Predicated region
    $region26: #{tpu_custom_call.1} parent=1 // pred_check
      _
    $region27: #{tpu_custom_call.1} parent=1 // pred_check_branch
      %59 = sbr.rel (0) target = $region29
    $region28: #{tpu_custom_call.1} parent=1 // pred_region
      %61 = dma.done [#allocation6], 512
    $region29: #{tpu_custom_call.1} parent=1 // pred_fallthru
      _
    // Predicated region
    $region30: #{tpu_custom_call.1} parent=1 // pred_check
      _
    $region31: #{tpu_custom_call.1} parent=1 // pred_check_branch
      %63 = sbr.rel (0) target = $region33
    $region32: #{tpu_custom_call.1} parent=1 // pred_region
      %65 = dma.done [#allocation6], 2048
    $region33: #{tpu_custom_call.1} parent=1 // pred_fallthru
      _
    %v66 = vld [vmem:[#allocation2] sm:$0xff]
    %v67 = vld [vmem:[#allocation5] sm:$0xff]
    %v68 = vld [vmem:[#allocation5 + $0x8] sm:$0xff]
    %v69 = vld [vmem:[#allocation5 + $0x10] sm:$0xff]
    %v70 = vld [vmem:[#allocation5 + $0x18] sm:$0xff]
    %v71 = vld [vmem:[%s2] sm:$0x1]
    %v73 = vperm.slane %v71, 0
    %vm75 = vcmask 261120
    %v77 = vsel %vm75, %v66, 0
    %79 = vmatpush.msra.mxu0 0.0
    %80 = vmatpush.msra.mxu0 0.0
    %81 = vmatpush.msra.mxu0 0.0
    %82 = vmatpush.msra.mxu0 0.0
    %83 = vmatpush.msra.mxu0 0.0
    %84 = vmatpush.msra.mxu0 0.0
    %85 = vmatpush.msra.mxu0 0.0
    %86 = vmatpush.msra.mxu0 0.0
    %87 = vmatpush.msra.mxu0 0.0
    %88 = vmatpush.msra.mxu0 0.0
    %89 = vmatpush.msra.mxu0 0.0
    %90 = vmatpush.msra.mxu0 0.0
    %91 = vmatpush.msra.mxu0 %v70
    %92 = vmatpush.msra.mxu0 %v69
    %93 = vmatpush.msra.mxu0 %v68
    %94 = vmatpush.msra.mxu0 %v67
    %95 = vmatmul.f32.gmra.mxu0 %v77
    %v96 = vpop.f32.mrf.mxu0
    %v97 = vadd.f32 %v73, %v96
    %98 = vdwg.mxu0
    %v99 = vmax.f32 %v97, 0.0
    %v100 = vld [vmem:[#allocation7] sm:$0xff]
    %v101 = vld [vmem:[#allocation7 + $0x8] sm:$0xff]
    %v102 = vld [vmem:[#allocation7 + $0x10] sm:$0xff]
    %v103 = vld [vmem:[#allocation7 + $0x18] sm:$0xff]
    %v104 = vld [vmem:[#allocation7 + $0x20] sm:$0xff]
    %v105 = vld [vmem:[#allocation7 + $0x28] sm:$0xff]
    %v106 = vld [vmem:[#allocation7 + $0x30] sm:$0xff]
    %v107 = vld [vmem:[#allocation7 + $0x38] sm:$0xff]
    %v108 = vld [vmem:[#allocation7 + $0x40] sm:$0xff]
    %v109 = vld [vmem:[#allocation7 + $0x48] sm:$0xff]
    %v110 = vld [vmem:[#allocation7 + $0x50] sm:$0xff]
    %v111 = vld [vmem:[#allocation7 + $0x58] sm:$0xff]
    %v112 = vld [vmem:[#allocation7 + $0x60] sm:$0xff]
    %v113 = vld [vmem:[#allocation7 + $0x68] sm:$0xff]
    %v114 = vld [vmem:[#allocation7 + $0x70] sm:$0xff]
    %v115 = vld [vmem:[#allocation7 + $0x78] sm:$0xff]
    %v116 = vld [vmem:[%s4] sm:$0x1]
    %v118 = vperm.slane %v116, 0
    %120 = vmatpush.msra.mxu0 %v115
    %121 = vmatpush.msra.mxu0 %v114
    %122 = vmatpush.msra.mxu0 %v113
    %123 = vmatpush.msra.mxu0 %v112
    %124 = vmatpush.msra.mxu0 %v111
    %125 = vmatpush.msra.mxu0 %v110
    %126 = vmatpush.msra.mxu0 %v109
    %127 = vmatpush.msra.mxu0 %v108
    %128 = vmatpush.msra.mxu0 %v107
    %129 = vmatpush.msra.mxu0 %v106
    %130 = vmatpush.msra.mxu0 %v105
    %131 = vmatpush.msra.mxu0 %v104
    %132 = vmatpush.msra.mxu0 %v103
    %133 = vmatpush.msra.mxu0 %v102
    %134 = vmatpush.msra.mxu0 %v101
    %135 = vmatpush.msra.mxu0 %v100
    %136 = vmatmul.f32.gmra.mxu0 %v99
    %v137 = vpop.f32.mrf.mxu0
    %v138 = vadd.f32 %v118, %v137
    %139 = vdwg.mxu0
    %140 = vst [vmem:[#allocation8] sm:$0xff] %v138
    // Predicated region
    $region34: #{tpu_custom_call.1} parent=1 // pred_check
      _
    $region35: #{tpu_custom_call.1} parent=1 // pred_check_branch
      %142 = sbr.rel (0) target = $region37
    $region36: #{tpu_custom_call.1} parent=1 // pred_region
      %144 = vsyncadd [#allocation4], 0
      %s146 = sshll.u32 [#allocation8], 4
      %s147 = int_to_ptr.vmem [resolvable:$true] %s146
      %s148 = sshll.u32 %s5, 4
      %s149 = int_to_ptr.hbm [resolvable:$true] %s148
      %151 = dma.vmem_to_hbm [thread:$0]  %s147, 128, %s149, [#allocation4]
    $region37: #{tpu_custom_call.1} parent=1 // pred_fallthru
      _
    // Predicated region
    $region38: #{tpu_custom_call.1} parent=1 // pred_check
      _
    $region39: #{tpu_custom_call.1} parent=1 // pred_check_branch
      %153 = sbr.rel (0) target = $region41
    $region40: #{tpu_custom_call.1} parent=1 // pred_region
      %155 = dma.done [#allocation4], 128
    $region41: #{tpu_custom_call.1} parent=1 // pred_fallthru
      _
    %156 = vsyncpa [#allocation3], 1
    %157 = vsyncpa [#allocation6], 1
    %158 = vsyncpa [#allocation4], 1

</llo_original>
